<compile_context>
chip_gen: v5e
topology: v5e:2x2
jax: 0.10.0
libtpu: 0.0.40
codegen_flags: <defaults>
</compile_context>

<pallas_src>
import functools

import jax
import jax.numpy as jnp
from jax import lax
from jax.experimental import pallas as pl
from jax.experimental.pallas import tpu as pltpu


def _round_up(x: int, m: int) -> int:
    return ((x + m - 1) // m) * m


def _bce_dice_partial_kernel(p_ref, t_ref, bce_ref, inter_ref, psum_ref,
                             *, hw: int, lanes_t: int, need_mask: bool):
    """One (rows_t, lanes_t) tile: accumulate per-row partial sums.

    bce_ref   : per-row sum of (t*log(p) + (1-t)*log(1-p))  (negated in epilogue)
    inter_ref : per-row sum of p*t
    psum_ref  : per-row sum of p+t   (folded sum_p + sum_t)
    Outputs stay resident across the lane (reduction) grid axis.
    """
    k = pl.program_id(1)

    @pl.when(k == 0)
    def _():
        bce_ref[...] = jnp.zeros_like(bce_ref)
        inter_ref[...] = jnp.zeros_like(inter_ref)
        psum_ref[...] = jnp.zeros_like(psum_ref)

    p = p_ref[...].astype(jnp.float32)
    t = t_ref[...].astype(jnp.float32)

    if need_mask:
        # Ragged last lane tile: zero OOB lanes so they contribute exactly 0
        # to every accumulated sum (zeroed p,t give bce term 0 after clamping).
        lane = lax.broadcasted_iota(jnp.int32, p.shape, 1)
        valid = (k * lanes_t + lane) < hw
        zero = jnp.zeros_like(p)
        p = jnp.where(valid, p, zero)
        t = jnp.where(valid, t, zero)

    # nn.BCELoss clamps each log term at -100.
    log_p = jnp.maximum(jnp.log(p), -100.0)
    log_1mp = jnp.maximum(jnp.log(1.0 - p), -100.0)
    # t*log_p + (1-t)*log_1mp == t*(log_p - log_1mp) + log_1mp  (fewer VPU ops).
    bce_pos = t * (log_p - log_1mp) + log_1mp

    bce_ref[...] += jnp.sum(bce_pos, axis=1, keepdims=True)
    inter_ref[...] += jnp.sum(p * t, axis=1, keepdims=True)
    psum_ref[...] += jnp.sum(p + t, axis=1, keepdims=True)


def bce_dice_loss(preds, targets, alpha: float = 0.5, smooth: float = 1e-6):
    """preds, targets: (N, C, H, W); preds are probabilities in (0, 1)."""
    N, C, H, W = preds.shape
    NC, HW = N * C, H * W

    # Free reshape (merges contiguous dims): per-(n,c) reduction runs on lanes.
    p2 = preds.reshape(NC, HW)
    t2 = targets.reshape(NC, HW)

    # Tile selection: rows a multiple of 8 (<=256), lanes a multiple of 128
    # sized so each input tile is ~2 MiB f32 (capped at 32768 lanes). With
    # double buffering of both inputs VMEM stays <= ~8 MiB.
    rows_t = min(_round_up(NC, 8), 256)
    budget_elems = (2 * 1024 * 1024) // 4           # ~2 MiB per input tile (f32)
    lane_cap = max(128, ((budget_elems // rows_t) // 128) * 128)
    lanes_t = min(_round_up(HW, 128), lane_cap, 32768)

    grid = (pl.cdiv(NC, rows_t), pl.cdiv(HW, lanes_t))
    need_mask = (HW % lanes_t) != 0

    kernel = functools.partial(
        _bce_dice_partial_kernel, hw=HW, lanes_t=lanes_t, need_mask=need_mask)

    in_spec = pl.BlockSpec((rows_t, lanes_t), lambda i, k: (i, k))
    row_spec = pl.BlockSpec((rows_t, 1), lambda i, k: (i, 0))
    row_out = jax.ShapeDtypeStruct((NC, 1), jnp.float32)

    bce_rows, inter_rows, psum_rows = pl.pallas_call(
        kernel,
        out_shape=(row_out, row_out, row_out),
        grid=grid,
        in_specs=[in_spec, in_spec],
        out_specs=(row_spec, row_spec, row_spec),
        compiler_params=pltpu.CompilerParams(
            dimension_semantics=("parallel", "arbitrary"),
            vmem_limit_bytes=32 * 1024 * 1024,
        ),
    )(p2, t2)

    # Tiny O(N*C) epilogue in plain JAX.
    bce_mean = -jnp.sum(bce_rows[:, 0]) / float(NC * HW)
    dice = (2.0 * inter_rows[:, 0] + smooth) / (psum_rows[:, 0] + smooth)
    dice_loss_val = 1.0 - jnp.mean(dice)
    return alpha * bce_mean + (1.0 - alpha) * dice_loss_val


if __name__ == "__main__":
    key = jax.random.PRNGKey(0)
    k1, k2 = jax.random.split(key)

    N, C, H, W = 2, 4, 16, 16
    preds = jax.nn.sigmoid(jax.random.normal(k1, (N, C, H, W), dtype=jnp.float32))
    targets = (jax.random.uniform(k2, (N, C, H, W)) > 0.5).astype(jnp.float32)

    loss_fn = jax.jit(lambda p, t: bce_dice_loss(p, t, alpha=0.5))
    loss = loss_fn(preds, targets)
    jax.block_until_ready(loss)

    # Pure-JAX reference (mirrors PyTorch BCELoss + dice_loss).
    bce_ref = jnp.mean(
        -(targets * jnp.maximum(jnp.log(preds), -100.0)
          + (1.0 - targets) * jnp.maximum(jnp.log(1.0 - preds), -100.0))
    )
    inter_ref = jnp.sum(preds * targets, axis=(2, 3))
    dice_ref = (2.0 * inter_ref + 1e-6) / (
        jnp.sum(preds, axis=(2, 3)) + jnp.sum(targets, axis=(2, 3)) + 1e-6
    )
    ref = 0.5 * bce_ref + 0.5 * (1.0 - jnp.mean(dice_ref))

    assert jnp.allclose(loss, ref, rtol=1e-5, atol=1e-5), (loss, ref)
    print("KERNEL_OK")
</pallas_src>

<mosaic_0001>
module attributes {stable_mosaic.version = 11 : i64} {
  func.func @_bce_dice_partial_kernel(%arg0: i32, %arg1: i32, %arg2: memref<8x256xf32, #tpu.memory_space<vmem>>, %arg3: memref<8x256xf32, #tpu.memory_space<vmem>>, %arg4: memref<8x1xf32, #tpu.memory_space<vmem>>, %arg5: memref<8x1xf32, #tpu.memory_space<vmem>>, %arg6: memref<8x1xf32, #tpu.memory_space<vmem>>) attributes {dimension_semantics = [#tpu.dimension_semantics<parallel>, #tpu.dimension_semantics<arbitrary>], iteration_bounds = array<i64: 1, 1>, scalar_prefetch = 0 : i64, scratch_operands = 0 : i64, tpu.core_type = #tpu.core_type<tc>, window_params = [{transform_indices = @transform_0, window_bounds = array<i64: 8, 256>}, {transform_indices = @transform_1, window_bounds = array<i64: 8, 256>}, {transform_indices = @transform_2, window_bounds = array<i64: 8, 1>}, {transform_indices = @transform_3, window_bounds = array<i64: 8, 1>}, {transform_indices = @transform_4, window_bounds = array<i64: 8, 1>}]} {
    %c0_i32 = arith.constant 0 : i32
    %0 = arith.cmpi eq, %arg1, %c0_i32 : i32
    %1 = arith.extui %0 : i1 to i32
    %c0_i32_0 = arith.constant 0 : i32
    %2 = arith.cmpi ne, %1, %c0_i32_0 : i32
    scf.if %2 {
      %cst_21 = arith.constant 0.000000e+00 : f32
      %33 = vector.broadcast %cst_21 : f32 to vector<8x1xf32>
      %c0_22 = arith.constant 0 : index
      %c0_23 = arith.constant 0 : index
      %34 = vector.load %arg4[%c0_22, %c0_23] : memref<8x1xf32, #tpu.memory_space<vmem>>, vector<8x1xf32>
      tpu.vector_store %arg4[%c0_22, %c0_23], %33 {strides = array<i32>} : memref<8x1xf32, #tpu.memory_space<vmem>>, vector<8x1xf32>,
      %cst_24 = arith.constant 0.000000e+00 : f32
      %35 = vector.broadcast %cst_24 : f32 to vector<8x1xf32>
      %c0_25 = arith.constant 0 : index
      %c0_26 = arith.constant 0 : index
      %36 = vector.load %arg5[%c0_25, %c0_26] : memref<8x1xf32, #tpu.memory_space<vmem>>, vector<8x1xf32>
      tpu.vector_store %arg5[%c0_25, %c0_26], %35 {strides = array<i32>} : memref<8x1xf32, #tpu.memory_space<vmem>>, vector<8x1xf32>,
      %cst_27 = arith.constant 0.000000e+00 : f32
      %37 = vector.broadcast %cst_27 : f32 to vector<8x1xf32>
      %c0_28 = arith.constant 0 : index
      %c0_29 = arith.constant 0 : index
      %38 = vector.load %arg6[%c0_28, %c0_29] : memref<8x1xf32, #tpu.memory_space<vmem>>, vector<8x1xf32>
      tpu.vector_store %arg6[%c0_28, %c0_29], %37 {strides = array<i32>} : memref<8x1xf32, #tpu.memory_space<vmem>>, vector<8x1xf32>,
    } else {
    }
    %c0 = arith.constant 0 : index
    %c0_1 = arith.constant 0 : index
    %3 = vector.load %arg2[%c0, %c0_1] : memref<8x256xf32, #tpu.memory_space<vmem>>, vector<8x256xf32>
    %c0_2 = arith.constant 0 : index
    %c0_3 = arith.constant 0 : index
    %4 = vector.load %arg3[%c0_2, %c0_3] : memref<8x256xf32, #tpu.memory_space<vmem>>, vector<8x256xf32>
    %5 = math.log %3 : vector<8x256xf32>
    %cst = arith.constant -1.000000e+02 : f32
    %6 = vector.broadcast %cst : f32 to vector<8x256xf32>
    %7 = arith.maximumf %5, %6 : vector<8x256xf32>
    %cst_4 = arith.constant 1.000000e+00 : f32
    %8 = vector.broadcast %cst_4 : f32 to vector<8x256xf32>
    %9 = arith.subf %8, %3 : vector<8x256xf32>
    %10 = math.log %9 : vector<8x256xf32>
    %cst_5 = arith.constant -1.000000e+02 : f32
    %11 = vector.broadcast %cst_5 : f32 to vector<8x256xf32>
    %12 = arith.maximumf %10, %11 : vector<8x256xf32>
    %13 = arith.subf %7, %12 : vector<8x256xf32>
    %14 = arith.mulf %4, %13 : vector<8x256xf32>
    %15 = arith.addf %14, %12 : vector<8x256xf32>
    %c0_6 = arith.constant 0 : index
    %c0_7 = arith.constant 0 : index
    %16 = vector.load %arg4[%c0_6, %c0_7] : memref<8x1xf32, #tpu.memory_space<vmem>>, vector<8x1xf32>
    %cst_8 = arith.constant dense<0.000000e+00> : vector<8xf32>
    %17 = vector.multi_reduction <add>, %15, %cst_8 [1] : vector<8x256xf32> to vector<8xf32>
    %18 = vector.shape_cast %17 : vector<8xf32> to vector<8x1xf32>
    %19 = arith.addf %16, %18 : vector<8x1xf32>
    %c0_9 = arith.constant 0 : index
    %c0_10 = arith.constant 0 : index
    %20 = vector.load %arg4[%c0_9, %c0_10] : memref<8x1xf32, #tpu.memory_space<vmem>>, vector<8x1xf32>
    tpu.vector_store %arg4[%c0_9, %c0_10], %19 {strides = array<i32>} : memref<8x1xf32, #tpu.memory_space<vmem>>, vector<8x1xf32>,
    %c0_11 = arith.constant 0 : index
    %c0_12 = arith.constant 0 : index
    %21 = vector.load %arg5[%c0_11, %c0_12] : memref<8x1xf32, #tpu.memory_space<vmem>>, vector<8x1xf32>
    %22 = arith.mulf %3, %4 : vector<8x256xf32>
    %cst_13 = arith.constant dense<0.000000e+00> : vector<8xf32>
    %23 = vector.multi_reduction <add>, %22, %cst_13 [1] : vector<8x256xf32> to vector<8xf32>
    %24 = vector.shape_cast %23 : vector<8xf32> to vector<8x1xf32>
    %25 = arith.addf %21, %24 : vector<8x1xf32>
    %c0_14 = arith.constant 0 : index
    %c0_15 = arith.constant 0 : index
    %26 = vector.load %arg5[%c0_14, %c0_15] : memref<8x1xf32, #tpu.memory_space<vmem>>, vector<8x1xf32>
    tpu.vector_store %arg5[%c0_14, %c0_15], %25 {strides = array<i32>} : memref<8x1xf32, #tpu.memory_space<vmem>>, vector<8x1xf32>,
    %c0_16 = arith.constant 0 : index
    %c0_17 = arith.constant 0 : index
    %27 = vector.load %arg6[%c0_16, %c0_17] : memref<8x1xf32, #tpu.memory_space<vmem>>, vector<8x1xf32>
    %28 = arith.addf %3, %4 : vector<8x256xf32>
    %cst_18 = arith.constant dense<0.000000e+00> : vector<8xf32>
    %29 = vector.multi_reduction <add>, %28, %cst_18 [1] : vector<8x256xf32> to vector<8xf32>
    %30 = vector.shape_cast %29 : vector<8xf32> to vector<8x1xf32>
    %31 = arith.addf %27, %30 : vector<8x1xf32>
    %c0_19 = arith.constant 0 : index
    %c0_20 = arith.constant 0 : index
    %32 = vector.load %arg6[%c0_19, %c0_20] : memref<8x1xf32, #tpu.memory_space<vmem>>, vector<8x1xf32>
    tpu.vector_store %arg6[%c0_19, %c0_20], %31 {strides = array<i32>} : memref<8x1xf32, #tpu.memory_space<vmem>>, vector<8x1xf32>,
    return
  }
  func.func @transform_0(%arg0: i32, %arg1: i32) -> (i32, i32) {
    %c0_i32 = arith.constant 0 : i32
    return %arg0, %arg1 : i32, i32
  }
  func.func @transform_1(%arg0: i32, %arg1: i32) -> (i32, i32) {
    %c0_i32 = arith.constant 0 : i32
    return %arg0, %arg1 : i32, i32
  }
  func.func @transform_2(%arg0: i32, %arg1: i32) -> (i32, i32) {
    %c0_i32 = arith.constant 0 : i32
    %c0_i32_0 = arith.constant 0 : i32
    return %arg0, %c0_i32 : i32, i32
  }
  func.func @transform_3(%arg0: i32, %arg1: i32) -> (i32, i32) {
    %c0_i32 = arith.constant 0 : i32
    %c0_i32_0 = arith.constant 0 : i32
    return %arg0, %c0_i32 : i32, i32
  }
  func.func @transform_4(%arg0: i32, %arg1: i32) -> (i32, i32) {
    %c0_i32 = arith.constant 0 : i32
    %c0_i32_0 = arith.constant 0 : i32
    return %arg0, %c0_i32 : i32, i32
  }
}

</mosaic_0001>

<llo_original>
// kernel: _lambda_.1
$region0: #{_lambda_.1}
  #allocation0 [shape = 'u32[]', space=smem, size = 0x4, offset = 0x4, fixed_abs, tag = 'smem constant byte address 0x4 - core index']
  #allocation1 [shape = 'u32[72,128]{1,0:T(1,128)}', space=vmem, size = 0x9000, scoped, tag = 'internal scratch']
  %s0 = inlined_call_operand.vmem [shape: f32[8,256], index: 0, kind: input, shape index: {}]
  %s1 = inlined_call_operand.vmem [shape: f32[8,256], index: 1, kind: input, shape index: {}]
  %s2 = inlined_call_operand.vmem [shape: f32[8,1], index: 2, kind: output, shape index: {0}]
  %s3 = inlined_call_operand.vmem [shape: f32[8,1], index: 3, kind: output, shape index: {1}]
  %s4 = inlined_call_operand.vmem [shape: f32[8,1], index: 4, kind: output, shape index: {2}]
  %5 = xla_tuple %s2, %s3, %s4
  %s6 = sld [smem:[#allocation0]]
  $region38: #{_lambda_.1} parent=0
    _
  %s8 = ssub.s32 1, %s6
  %s9 = scalar_select 0, %s8, %s6
  // Predicated region
  $region2: #{_lambda_.1} parent=0 // pred_check
    _
  $region3: #{_lambda_.1} parent=0 // pred_check_branch
    %11 = sbr.rel (0) target = $region5
  $region4: #{_lambda_.1} parent=0 // pred_region
    _
  $region5: #{_lambda_.1} parent=0 // pred_fallthru
    _
  // Predicated region
  $region6: #{_lambda_.1} parent=0 // pred_check
    _
  $region7: #{_lambda_.1} parent=0 // pred_check_branch
    %13 = sbr.rel (0) target = $region9
  $region8: #{_lambda_.1} parent=0 // pred_region
    _
  $region9: #{_lambda_.1} parent=0 // pred_fallthru
    _
  %p14 = scmp.eq.s32.totalorder 0, 0
  // Predicated region
  $region10: #{_lambda_.1} parent=0 // pred_check
    %p15 = pneg %p14
  $region11: #{_lambda_.1} parent=0 // pred_check_branch
    %17 = sbr.rel (%p15) target = $region13
  $region12: #{_lambda_.1} parent=0 // pred_region
    %vm18 = vcmask 7168
    %19 = vst.msk [vmem:[%s2] sm:$0xff] %vm18, 0.0
    %20 = vst.msk [vmem:[%s3] sm:$0xff] %vm18, 0.0
    %21 = vst.msk [vmem:[%s4] sm:$0xff] %vm18, 0.0
  $region13: #{_lambda_.1} parent=0 // pred_fallthru
    _
  %v22 = vld [vmem:[%s0] sm:$0xff]
  %v23 = vld [vmem:[%s0 + $0x8] sm:$0xff]
  %v24 = vld [vmem:[%s1] sm:$0xff]
  %v25 = vld [vmem:[%s1 + $0x8] sm:$0xff]
  %v26 = vlog2.pop %v22
  %v27 = vmul.f32 %v26, 0.6931472
  %v28 = vlog2.pop %v23
  %v29 = vmul.f32 %v28, 0.6931472
  %v30 = vmax.f32 %v27, -100.0
  %v31 = vmax.f32 %v29, -100.0
  %v32 = vsub.f32 1.0, %v22
  %v33 = vsub.f32 1.0, %v23
  %v34 = vlog2.pop %v32
  %v35 = vmul.f32 %v34, 0.6931472
  %v36 = vlog2.pop %v33
  %v37 = vmul.f32 %v36, 0.6931472
  %v38 = vmax.f32 %v35, -100.0
  %v39 = vmax.f32 %v37, -100.0
  %v40 = vsub.f32 %v30, %v38
  %v41 = vsub.f32 %v31, %v39
  %v42 = vmul.f32 %v24, %v40
  %v43 = vmul.f32 %v25, %v41
  %v44 = vadd.f32 %v42, %v38
  %v45 = vadd.f32 %v43, %v39
  %v46 = vld [vmem:[%s2] sm:$0xff]
  %v47 = vadd.f32 %v44, %v45
  %48 = vadd.xlane.f32.xlu0 %v47
  %v49 = vpop.xlane.xlu0 %48
  %v50 = vadd.f32 %v46, %v49
  %vm51 = vcmask 7168
  %52 = vst.msk [vmem:[%s2] sm:$0xff] %vm51, %v50
  %v53 = vld [vmem:[%s3] sm:$0xff]
  %v54 = vmul.f32 %v22, %v24
  %v55 = vmul.f32 %v23, %v25
  %v56 = vadd.f32 %v54, %v55
  %57 = vadd.xlane.f32.xlu0 %v56
  %v58 = vpop.xlane.xlu0 %57
  %v59 = vadd.f32 %v53, %v58
  %60 = vst.msk [vmem:[%s3] sm:$0xff] %vm51, %v59
  %v61 = vld [vmem:[%s4] sm:$0xff]
  %v62 = vadd.f32 %v22, %v24
  %v63 = vadd.f32 %v23, %v25
  %v64 = vadd.f32 %v62, %v63
  %65 = vadd.xlane.f32.xlu0 %v64
  %v66 = vpop.xlane.xlu0 %65
  %v67 = vadd.f32 %v61, %v66
  %68 = vst.msk [vmem:[%s4] sm:$0xff] %vm51, %v67
  // Predicated region
  $region14: #{_lambda_.1} parent=0 // pred_check
    _
  $region15: #{_lambda_.1} parent=0 // pred_check_branch
    %70 = sbr.rel (0) target = $region17
  $region16: #{_lambda_.1} parent=0 // pred_region
    _
  $region17: #{_lambda_.1} parent=0 // pred_fallthru
    _
  // Predicated region
  $region18: #{_lambda_.1} parent=0 // pred_check
    _
  $region19: #{_lambda_.1} parent=0 // pred_check_branch
    %72 = sbr.rel (0) target = $region21
  $region20: #{_lambda_.1} parent=0 // pred_region
    _
  $region21: #{_lambda_.1} parent=0 // pred_fallthru
    _
  // Predicated region
  $region22: #{_lambda_.1} parent=0 // pred_check
    _
  $region23: #{_lambda_.1} parent=0 // pred_check_branch
    %74 = sbr.rel (0) target = $region25
  $region24: #{_lambda_.1} parent=0 // pred_region
    _
  $region25: #{_lambda_.1} parent=0 // pred_fallthru
    _
  // Predicated region
  $region26: #{_lambda_.1} parent=0 // pred_check
    _
  $region27: #{_lambda_.1} parent=0 // pred_check_branch
    %76 = sbr.rel (0) target = $region29
  $region28: #{_lambda_.1} parent=0 // pred_region
    _
  $region29: #{_lambda_.1} parent=0 // pred_fallthru
    _
  // Predicated region
  $region30: #{_lambda_.1} parent=0 // pred_check
    _
  $region31: #{_lambda_.1} parent=0 // pred_check_branch
    %78 = sbr.rel (0) target = $region33
  $region32: #{_lambda_.1} parent=0 // pred_region
    _
  $region33: #{_lambda_.1} parent=0 // pred_fallthru
    _
  // Predicated region
  $region34: #{_lambda_.1} parent=0 // pred_check
    _
  $region35: #{_lambda_.1} parent=0 // pred_check_branch
    %80 = sbr.rel (0) target = $region37
  $region36: #{_lambda_.1} parent=0 // pred_region
    _
  $region37: #{_lambda_.1} parent=0 // pred_fallthru
    _

</llo_original>
